<compile_context>
chip_gen: v7x
topology: tpu7x:2x2x1
jax: 0.10.0
libtpu: 0.0.40
codegen_flags: <defaults>
</compile_context>

<pallas_src>
from functools import partial

import numpy as np
import jax
import jax.numpy as jnp
from jax.experimental import pallas as pl
from jax.experimental.pallas import tpu as pltpu


# ----------------------------- Pallas kernel --------------------------------

def rope_kernel(x_ref, cos_ref, sin_ref, out_ref, *, half):
    """Rotary embedding for one (seq_tile, dim) slab.

    x_ref:   (1, bt, D)   input tile (x.dtype)
    cos_ref: (bt, D)      [cos | cos]   (f32)
    sin_ref: (bt, D)      [-sin | sin]  (f32)
    out_ref: (1, bt, D)

    out = x * [cos|cos] + [x_imag|x_real] * [-sin|sin]
        = [xr*cos - xi*sin | xr*sin + xi*cos]        (== torch forward)
    """
    x = x_ref[0]                                           # (bt, D)
    # Swap the two halves: [x_real | x_imag] -> [x_imag | x_real].
    x_rot = jnp.concatenate([x[:, half:], x[:, :half]], axis=-1)
    y = x * cos_ref[...] + x_rot * sin_ref[...]            # promotes to f32 if x is bf16
    out_ref[0] = y.astype(out_ref.dtype)


# ----------------------------- Tiling helpers --------------------------------

def _pick_seq_tile(T: int, D: int, itemsize: int) -> int:
    """Largest sublane-aligned sequence tile dividing T, within a VMEM budget."""
    # Sublane packing: 8 rows (f32), 16 (bf16/f16), 32 (int8/fp8).
    sub = max(8, 32 // max(itemsize, 1))
    # Per-row double-buffered footprint: x-in + out (x dtype) + cos + sin (f32).
    per_row_bytes = D * (4 * itemsize + 16)
    budget = 24 << 20                       # stay well under v7x's 32 MiB scoped VMEM
    cap = min(T, 1024, max(sub, budget // max(per_row_bytes, 1)))
    bt = T                                  # fallback: full extent (always legal)
    for cand in range((cap // sub) * sub, 0, -sub):
        if T % cand == 0:
            bt = cand
            break
    return bt


# ----------------------------- Wrapper ---------------------------------------

def rope_forward(x, cos_full, sin_signed):
    """Pallas equivalent of RotatoryPositionalEncoding.forward.

    x:          (..., T, dim)
    cos_full:   (max_length, dim)  pre-expanded [cos | cos]   (f32)
    sin_signed: (max_length, dim)  pre-expanded [-sin | sin]  (f32)
    """
    orig_shape = x.shape
    T, D = orig_shape[-2], orig_shape[-1]
    assert D % 2 == 0
    assert T <= cos_full.shape[0], "sequence length exceeds max_length"
    # TODO(synk): if head_dim < 128, pack two heads per 128-lane row (with
    # matching tables) so output stores stay lane-dense; current layout keeps
    # the module's (..., T, D) shape as-is.
    half = D // 2
    B = int(np.prod(orig_shape[:-2])) if len(orig_shape) > 2 else 1
    x3 = x.reshape(B, T, D)

    itemsize = jnp.dtype(x.dtype).itemsize
    bt = _pick_seq_tile(T, D, itemsize)

    # Batch is the FAST grid axis: the table block index (which only depends on
    # the sequence-tile index) is constant across consecutive steps, so the
    # cos/sin tiles are DMA'd once per sequence tile instead of once per batch.
    grid = (T // bt, B)

    if bt % 8 == 0:
        # Tile-aligned table blocks: pass the full buffers, no per-call slice.
        cos_t, sin_t = cos_full, sin_signed
    else:
        # Fallback bt == T (not sublane-aligned): block must equal full extent.
        cos_t, sin_t = cos_full[:T], sin_signed[:T]

    # Explicit VMEM cap sized for the double-buffered x-in/out + cos/sin tiles.
    tile_bytes = bt * D * (4 * itemsize + 16)
    vmem_limit = int(min(max(2 * tile_bytes, 16 << 20), 32 << 20))

    out = pl.pallas_call(
        partial(rope_kernel, half=half),
        out_shape=jax.ShapeDtypeStruct((B, T, D), x.dtype),
        grid_spec=pltpu.PrefetchScalarGridSpec(
            num_scalar_prefetch=0,
            grid=grid,
            in_specs=[
                pl.BlockSpec((1, bt, D), lambda t, b: (b, t, 0)),   # x
                pl.BlockSpec((bt, D), lambda t, b: (t, 0)),         # [cos|cos]
                pl.BlockSpec((bt, D), lambda t, b: (t, 0)),         # [-sin|sin]
            ],
            out_specs=pl.BlockSpec((1, bt, D), lambda t, b: (b, t, 0)),
        ),
        compiler_params=pltpu.CompilerParams(
            dimension_semantics=("parallel", "parallel"),
            vmem_limit_bytes=vmem_limit),
    )(x3, cos_t, sin_t)

    return out.reshape(orig_shape)


# ----------------------------- Module tables ----------------------------------

def make_rope_tables(dim, max_length):
    """Buffers matching the torch module, plus the lane-dense expanded tables.

    Returns (cos_half, sin_half, cos_full, sin_signed).  The expansion
    ([cos | cos], [-sin | sin]) is done ONCE here rather than per forward call,
    and the tables stay f32 so bf16 activations still get f32 rotary math.
    """
    positions = jnp.arange(max_length, dtype=jnp.float32)[:, None]               # (L, 1)
    theta = 1.0 / (10000.0 ** (jnp.arange(0, dim, 2, dtype=jnp.float32) / dim))  # (dim/2,)
    ang = positions * theta[None, :]                                             # (L, dim/2)
    cos, sin = jnp.cos(ang), jnp.sin(ang)
    cos_full = jnp.concatenate([cos, cos], axis=-1)        # (L, dim)
    sin_signed = jnp.concatenate([-sin, sin], axis=-1)      # (L, dim)
    return cos, sin, cos_full, sin_signed


# ----------------------------- Pure-JAX reference -----------------------------

def reference_rope(x, positions_cos, positions_sin):
    half = x.shape[-1] // 2
    T = x.shape[-2]
    c, s = positions_cos[:T], positions_sin[:T]
    xr, xi = x[..., :half], x[..., half:]
    return jnp.concatenate([xr * c - xi * s, xr * s + xi * c], axis=-1)


# ----------------------------- Main --------------------------------------------

if __name__ == "__main__":
    # dim = 128 -> last dim is exactly one vreg lane width (dense, unmasked
    # loads/stores); T = 8 is one f32 sublane group.
    B, T, dim, max_length = 2, 8, 128, 16

    key = jax.random.PRNGKey(0)
    x = jax.random.normal(key, (B, T, dim), jnp.float32)

    cos_half, sin_half, cos_full, sin_signed = make_rope_tables(dim, max_length)

    out = rope_forward(x, cos_full, sin_signed)
    out = jax.block_until_ready(out)

    ref = reference_rope(x, cos_half, sin_half)
    np.testing.assert_allclose(np.asarray(out), np.asarray(ref), rtol=1e-5, atol=1e-5)

    print("KERNEL_OK")
</pallas_src>

<mosaic_0001>
module attributes {stable_mosaic.version = 11 : i64} {
  func.func @rope_kernel(%arg0: i32, %arg1: i32, %arg2: memref<1x8x128xf32, #tpu.memory_space<vmem>>, %arg3: memref<8x128xf32, #tpu.memory_space<vmem>>, %arg4: memref<8x128xf32, #tpu.memory_space<vmem>>, %arg5: memref<1x8x128xf32, #tpu.memory_space<vmem>>) attributes {dimension_semantics = [#tpu.dimension_semantics<parallel>, #tpu.dimension_semantics<parallel>], iteration_bounds = array<i64: 1, 2>, scalar_prefetch = 0 : i64, scratch_operands = 0 : i64, tpu.core_type = #tpu.core_type<tc>, window_params = [{transform_indices = @transform_0, window_bounds = array<i64: 1, 8, 128>}, {transform_indices = @transform_1, window_bounds = array<i64: 8, 128>}, {transform_indices = @transform_2, window_bounds = array<i64: 8, 128>}, {transform_indices = @transform_3, window_bounds = array<i64: 1, 8, 128>}]} {
    %c0 = arith.constant 0 : index
    %c0_0 = arith.constant 0 : index
    %c0_1 = arith.constant 0 : index
    %0 = vector.load %arg2[%c0, %c0_0, %c0_1] : memref<1x8x128xf32, #tpu.memory_space<vmem>>, vector<1x8x128xf32>
    %1 = vector.shape_cast %0 : vector<1x8x128xf32> to vector<8x128xf32>
    %2 = vector.extract_strided_slice %1 {offsets = [0, 64], sizes = [8, 64], strides = [1, 1]} : vector<8x128xf32> to vector<8x64xf32>
    %3 = vector.extract_strided_slice %1 {offsets = [0, 0], sizes = [8, 64], strides = [1, 1]} : vector<8x128xf32> to vector<8x64xf32>
    %4 = tpu.concatenate %2, %3 in 1 : vector<8x64xf32>, vector<8x64xf32> -> vector<8x128xf32>
    %c0_2 = arith.constant 0 : index
    %c0_3 = arith.constant 0 : index
    %5 = vector.load %arg3[%c0_2, %c0_3] : memref<8x128xf32, #tpu.memory_space<vmem>>, vector<8x128xf32>
    %6 = arith.mulf %1, %5 : vector<8x128xf32>
    %c0_4 = arith.constant 0 : index
    %c0_5 = arith.constant 0 : index
    %7 = vector.load %arg4[%c0_4, %c0_5] : memref<8x128xf32, #tpu.memory_space<vmem>>, vector<8x128xf32>
    %8 = arith.mulf %4, %7 : vector<8x128xf32>
    %9 = arith.addf %6, %8 : vector<8x128xf32>
    %c0_6 = arith.constant 0 : index
    %c0_7 = arith.constant 0 : index
    %c0_8 = arith.constant 0 : index
    %10 = vector.load %arg5[%c0_6, %c0_7, %c0_8] : memref<1x8x128xf32, #tpu.memory_space<vmem>>, vector<1x8x128xf32>
    %11 = vector.shape_cast %10 : vector<1x8x128xf32> to vector<8x128xf32>
    %12 = vector.shape_cast %9 : vector<8x128xf32> to vector<1x8x128xf32>
    tpu.vector_store %arg5[%c0_6, %c0_7, %c0_8], %12 {strides = array<i32>} : memref<1x8x128xf32, #tpu.memory_space<vmem>>, vector<1x8x128xf32>,
    return
  }
  func.func @transform_0(%arg0: i32, %arg1: i32) -> (i32, i32, i32) {
    %c0_i32 = arith.constant 0 : i32
    %c0_i32_0 = arith.constant 0 : i32
    return %arg1, %arg0, %c0_i32 : i32, i32, i32
  }
  func.func @transform_1(%arg0: i32, %arg1: i32) -> (i32, i32) {
    %c0_i32 = arith.constant 0 : i32
    %c0_i32_0 = arith.constant 0 : i32
    return %arg0, %c0_i32 : i32, i32
  }
  func.func @transform_2(%arg0: i32, %arg1: i32) -> (i32, i32) {
    %c0_i32 = arith.constant 0 : i32
    %c0_i32_0 = arith.constant 0 : i32
    return %arg0, %c0_i32 : i32, i32
  }
  func.func @transform_3(%arg0: i32, %arg1: i32) -> (i32, i32, i32) {
    %c0_i32 = arith.constant 0 : i32
    %c0_i32_0 = arith.constant 0 : i32
    return %arg1, %arg0, %c0_i32 : i32, i32, i32
  }
}

</mosaic_0001>

<llo_original>
// kernel: tpu_custom_call.1
$region0: #{tpu_custom_call.1}
  #allocation0 [shape = 'u32[]', space=smem, size = 0x4, offset = 0x4, fixed_abs, tag = 'smem constant byte address 0x4 - core index']
  #allocation1 [shape = 'u32[144,128]{1,0:T(1,128)}', space=vmem, size = 0x12000, scoped, tag = 'internal scratch']
  %s0 = inlined_call_operand.hbm [shape: f32[2,8,128], index: 0, kind: input, shape index: {}]
  %s1 = inlined_call_operand.hbm [shape: f32[16,128], index: 1, kind: input, shape index: {}]
  %s2 = inlined_call_operand.hbm [shape: f32[16,128], index: 2, kind: input, shape index: {}]
  %s3 = inlined_call_operand.hbm [shape: f32[2,8,128], index: 3, kind: output, shape index: {}]
  %s4 = sld [smem:[#allocation0]]
  $region57: #{tpu_custom_call.1} parent=0
    _
  %s6 = ssub.s32 1, %s4
  %s7 = scalar_select 0, %s6, %s4
  $region1: #{tpu_custom_call.1} parent=0
    #allocation2 [shape = 'u8[8192]{0}', space=vmem, size = 0x2000, scoped, tag = 'input window, operand 0']
    #allocation3 [shape = 's32[2]{0}', space=sflag, size = 0x8, scoped, tag = 'scoped memory for tpu_custom_call.1']
    #allocation4 [shape = 's32[2]{0}', space=sflag, size = 0x8, scoped, tag = 'scoped memory for tpu_custom_call.1']
    #allocation5 [shape = 'u8[4096]{0}', space=vmem, size = 0x1000, scoped, tag = 'input window, operand 1, single buffered']
    #allocation6 [shape = 's32[1]{0}', space=sflag, size = 0x4, scoped, tag = 'scoped memory for tpu_custom_call.1']
    #allocation7 [shape = 'u8[4096]{0}', space=vmem, size = 0x1000, scoped, tag = 'input window, operand 2, single buffered']
    #allocation8 [shape = 'u8[8192]{0}', space=vmem, size = 0x2000, scoped, tag = 'output window, operand 0']
    %8 = vsyncpa [#allocation3], 0
    %s9 = scalar_lea.sflag [#allocation3], 1
    %10 = vsyncpa %s9, 0
    %11 = vsyncpa [#allocation6], 0
    %12 = vsyncpa [#allocation4], 0
    %s13 = scalar_lea.sflag [#allocation4], 1
    %14 = vsyncpa %s13, 0
    loop: start=0, step=1, limit=4
    $region2: #{tpu_custom_call.1} parent=1 // loop_pre_header
      _
    $region3: #{tpu_custom_call.1} parent=1 // loop_header
      %s16 = sphi 0, %s20
      %p17 = scmp.ge.s32.totalorder %s16, 4
      %s23 = sphi 0, %s35
      %s24 = sphi 0, %s31
      %s25 = sphi 0, %s23
      %s26 = sphi 0, %s24
      %s27 = sphi 0, %s25
      %s28 = sphi 0, %s26
      %s40 = sphi 0, %s42
      %s43 = sphi 0, %s40
      %s44 = sphi 0, %s43
      %s60 = sphi 0, %s44
      %s66 = sphi 0, %s68
      %s69 = sphi 0, %s66
      %s70 = sphi 0, %s69
      %s86 = sphi 0, %s70
      %s92 = sphi 0, %s94
      %s95 = sphi 0, %s92
      %s96 = sphi 0, %s95
      %s112 = sphi 0, %s96
      %s120 = sphi 0, %s122
      %s123 = sphi 0, %s120
      %s124 = sphi 0, %s123
      %s140 = sphi 0, %s124
    $region4: #{tpu_custom_call.1} parent=1 // loop_header_branch
      %19 = sbr.rel (%p17) target = $region8
    $region5: #{tpu_custom_call.1} parent=1 // loop_body
      %s21 = ssub.s32 %s16, 1
      %s22 = ssub.s32 %s16, 2
      %s29 = sadd.s32 1, %s24
      %p30 = scmp.ge.s32.totalorder %s29, 2
      %s31 = scalar_select %p30, 0, %s29
      %s32 = sadd.s32 1, %s23
      %s33 = scalar_select %p30, %s32, %s23
      %p34 = scmp.ge.s32.totalorder %s33, 1
      %s35 = scalar_select %p34, 0, %s33
      %s36 = ssub.s32 %s24, %s31
      %s37 = ssub.s32 %s23, %s35
      %s38 = sor.u32 %s36, %s37
      %p39 = scmp.eq.s32.totalorder %s38, 0
      %s41 = sadd.s32 %s40, 1
      %s42 = scalar_select %p39, %s40, %s41
      %p45 = pneg %p39
      %p46 = scmp.eq.s32.totalorder %s16, 1
      %p47 = por %p45, %p46
      %p48 = scmp.ne.s32.totalorder %s40, %s43
      %p49 = scmp.eq.s32.totalorder %s16, 0
      %p50 = por %p48, %p49
      %p51 = scmp.ne.s32.totalorder %s40, %s43
      %p52 = scmp.eq.s32.totalorder %s21, 1
      %p53 = por %p51, %p52
      %p54 = scmp.ne.s32.totalorder %s43, %s44
      %p55 = scmp.eq.s32.totalorder %s21, 0
      %p56 = por %p54, %p55
      %p57 = scmp.ne.s32.totalorder %s43, %s44
      %p58 = scmp.eq.s32.totalorder %s22, 1
      %p59 = por %p57, %p58
      %p61 = scmp.ne.s32.totalorder %s44, %s60
      %p62 = scmp.eq.s32.totalorder %s22, 0
      %p63 = por %p61, %p62
      %s64 = ssub.s32 %s23, %s35
      %p65 = scmp.eq.s32.totalorder %s64, 0
      %s67 = sadd.s32 %s66, 1
      %s68 = scalar_select %p65, %s66, %s67
      %p71 = pneg %p65
      %p72 = scmp.eq.s32.totalorder %s16, 1
      %p73 = por %p71, %p72
      %p74 = scmp.ne.s32.totalorder %s66, %s69
      %p75 = scmp.eq.s32.totalorder %s16, 0
      %p76 = por %p74, %p75
      %p77 = scmp.ne.s32.totalorder %s66, %s69
      %p78 = scmp.eq.s32.totalorder %s21, 1
      %p79 = por %p77, %p78
      %p80 = scmp.ne.s32.totalorder %s69, %s70
      %p81 = scmp.eq.s32.totalorder %s21, 0
      %p82 = por %p80, %p81
      %p83 = scmp.ne.s32.totalorder %s69, %s70
      %p84 = scmp.eq.s32.totalorder %s22, 1
      %p85 = por %p83, %p84
      %p87 = scmp.ne.s32.totalorder %s70, %s86
      %p88 = scmp.eq.s32.totalorder %s22, 0
      %p89 = por %p87, %p88
      %s90 = ssub.s32 %s23, %s35
      %p91 = scmp.eq.s32.totalorder %s90, 0
      %s93 = sadd.s32 %s92, 1
      %s94 = scalar_select %p91, %s92, %s93
      %p97 = pneg %p91
      %p98 = scmp.eq.s32.totalorder %s16, 1
      %p99 = por %p97, %p98
      %p100 = scmp.ne.s32.totalorder %s92, %s95
      %p101 = scmp.eq.s32.totalorder %s16, 0
      %p102 = por %p100, %p101
      %p103 = scmp.ne.s32.totalorder %s92, %s95
      %p104 = scmp.eq.s32.totalorder %s21, 1
      %p105 = por %p103, %p104
      %p106 = scmp.ne.s32.totalorder %s95, %s96
      %p107 = scmp.eq.s32.totalorder %s21, 0
      %p108 = por %p106, %p107
      %p109 = scmp.ne.s32.totalorder %s95, %s96
      %p110 = scmp.eq.s32.totalorder %s22, 1
      %p111 = por %p109, %p110
      %p113 = scmp.ne.s32.totalorder %s96, %s112
      %p114 = scmp.eq.s32.totalorder %s22, 0
      %p115 = por %p113, %p114
      %s116 = ssub.s32 %s24, %s31
      %s117 = ssub.s32 %s23, %s35
      %s118 = sor.u32 %s116, %s117
      %p119 = scmp.eq.s32.totalorder %s118, 0
      %s121 = sadd.s32 %s120, 1
      %s122 = scalar_select %p119, %s120, %s121
      %p125 = pneg %p119
      %p126 = scmp.eq.s32.totalorder %s16, 1
      %p127 = por %p125, %p126
      %p128 = scmp.ne.s32.totalorder %s120, %s123
      %p129 = scmp.eq.s32.totalorder %s16, 0
      %p130 = por %p128, %p129
      %p131 = scmp.ne.s32.totalorder %s120, %s123
      %p132 = scmp.eq.s32.totalorder %s21, 1
      %p133 = por %p131, %p132
      %p134 = scmp.ne.s32.totalorder %s123, %s124
      %p135 = scmp.eq.s32.totalorder %s21, 0
      %p136 = por %p134, %p135
      %p137 = scmp.ne.s32.totalorder %s123, %s124
      %p138 = scmp.eq.s32.totalorder %s22, 1
      %p139 = por %p137, %p138
      %p141 = scmp.ne.s32.totalorder %s124, %s140
      %p142 = scmp.eq.s32.totalorder %s22, 0
      %p143 = por %p141, %p142
      %p144 = scmp.le.s32.totalorder 1, %s16
      %p145 = scmp.lt.s32.totalorder %s16, 3
      %p146 = pnand %p144, %p145
      %p147 = pneg %p146
      // Predicated region
      $region9: #{tpu_custom_call.1} parent=5 // pred_check
        _
      $region10: #{tpu_custom_call.1} parent=5 // pred_check_branch
        %149 = sbr.rel (%p146) target = $region12
      $region11: #{tpu_custom_call.1} parent=5 // pred_region
        %s150 = ssub.s32 %s16, 1
        // Predicated region
        $region13: #{tpu_custom_call.1} parent=11 // pred_check
          %p151 = pneg %p82
        $region14: #{tpu_custom_call.1} parent=11 // pred_check_branch
          %153 = sbr.rel (%p151) target = $region16
        $region15: #{tpu_custom_call.1} parent=11 // pred_region
          %s155 = ssub.s32 128, 128
          %156 = vsyncadd [#allocation6], %s155
          %s157 = smul.addr %s25, 128
          %s158 = scalar_lea.hbm %s1, %s157
          %s160 = sshll.u32 [#allocation5], 4
          %s161 = int_to_ptr.vmem [resolvable:$true] %s160
          %163 = dma.hbm_to_vmem [thread:$0]  %s158, 128, %s161, [#allocation6]
        $region16: #{tpu_custom_call.1} parent=11 // pred_fallthru
          _
        // Predicated region
        $region17: #{tpu_custom_call.1} parent=11 // pred_check
          %p164 = pneg %p108
        $region18: #{tpu_custom_call.1} parent=11 // pred_check_branch
          %166 = sbr.rel (%p164) target = $region20
        $region19: #{tpu_custom_call.1} parent=11 // pred_region
          %s168 = ssub.s32 128, 128
          %169 = vsyncadd [#allocation6], %s168
          %s170 = smul.addr %s25, 128
          %s171 = scalar_lea.hbm %s2, %s170
          %s173 = sshll.u32 [#allocation7], 4
          %s174 = int_to_ptr.vmem [resolvable:$true] %s173
          %176 = dma.hbm_to_vmem [thread:$0]  %s171, 128, %s174, [#allocation6]
        $region20: #{tpu_custom_call.1} parent=11 // pred_fallthru
          _
      $region12: #{tpu_custom_call.1} parent=5 // pred_fallthru
        _
      %p177 = scmp.lt.s32.totalorder %s16, 2
      // Predicated region
      $region21: #{tpu_custom_call.1} parent=5 // pred_check
        %p178 = pneg %p177
      $region22: #{tpu_custom_call.1} parent=5 // pred_check_branch
        %180 = sbr.rel (%p178) target = $region24
      $region23: #{tpu_custom_call.1} parent=5 // pred_region
        // Predicated region
        $region25: #{tpu_custom_call.1} parent=23 // pred_check
          %p181 = pneg %p50
        $region26: #{tpu_custom_call.1} parent=23 // pred_check_branch
          %183 = sbr.rel (%p181) target = $region28
        $region27: #{tpu_custom_call.1} parent=23 // pred_region
          %s184 = sand.u32 %s40, 1
          %s185 = scalar_lea.sflag [#allocation3], %s184
          %s186 = sand.u32 %s40, 1
          %s187 = smul.addr %s186, 8
          %s188 = scalar_lea.vmem [#allocation2], %s187
          %s190 = ssub.s32 128, 128
          %191 = vsyncadd %s185, %s190
          %s192 = sadd.s32 %s23, %s24
          %s193 = smul.addr %s192, 128
          %s194 = scalar_lea.hbm %s0, %s193
          %s196 = sshll.u32 %s188, 4
          %s197 = int_to_ptr.vmem [resolvable:$true] %s196
          %199 = dma.hbm_to_vmem [thread:$0]  %s194, 128, %s197, %s185
        $region28: #{tpu_custom_call.1} parent=23 // pred_fallthru
          _
      $region24: #{tpu_custom_call.1} parent=5 // pred_fallthru
        _
      %p200 = scmp.le.s32.totalorder 1, %s16
      %p201 = scmp.lt.s32.totalorder %s16, 3
      %p202 = pnand %p200, %p201
      %p203 = pneg %p202
      // Predicated region
      $region29: #{tpu_custom_call.1} parent=5 // pred_check
        _
      $region30: #{tpu_custom_call.1} parent=5 // pred_check_branch
        %205 = sbr.rel (%p202) target = $region32
      $region31: #{tpu_custom_call.1} parent=5 // pred_region
        %s206 = ssub.s32 %s16, 1
        %s207 = sand.u32 %s43, 1
        %s208 = scalar_lea.sflag [#allocation3], %s207
        %s209 = sand.u32 %s43, 1
        %s210 = smul.addr %s209, 8
        %s211 = scalar_lea.vmem [#allocation2], %s210
        // Predicated region
        $region33: #{tpu_custom_call.1} parent=31 // pred_check
          %p212 = pneg %p56
        $region34: #{tpu_custom_call.1} parent=31 // pred_check_branch
          %214 = sbr.rel (%p212) target = $region36
        $region35: #{tpu_custom_call.1} parent=31 // pred_region
          %215 = dma.done %s208, 128
        $region36: #{tpu_custom_call.1} parent=31 // pred_fallthru
          _
        // Predicated region
        $region37: #{tpu_custom_call.1} parent=31 // pred_check
          %p216 = pneg %p82
        $region38: #{tpu_custom_call.1} parent=31 // pred_check_branch
          %218 = sbr.rel (%p216) target = $region40
        $region39: #{tpu_custom_call.1} parent=31 // pred_region
          %219 = dma.done [#allocation6], 128
        $region40: #{tpu_custom_call.1} parent=31 // pred_fallthru
          _
        // Predicated region
        $region41: #{tpu_custom_call.1} parent=31 // pred_check
          %p220 = pneg %p108
        $region42: #{tpu_custom_call.1} parent=31 // pred_check_branch
          %222 = sbr.rel (%p220) target = $region44
        $region43: #{tpu_custom_call.1} parent=31 // pred_region
          %223 = dma.done [#allocation6], 128
        $region44: #{tpu_custom_call.1} parent=31 // pred_fallthru
          _
        %s224 = sand.u32 %s43, 1
        %s225 = scalar_lea.sflag [#allocation3], %s224
        %s226 = sand.u32 %s43, 1
        %s227 = smul.addr %s226, 8
        %s228 = scalar_lea.vmem [#allocation2], %s227
        %p229 = pneg %p56
        %p230 = pneg %p53
        %p231 = pneg %p82
        %p232 = pneg %p79
        %p233 = pneg %p108
        %p234 = pneg %p105
        %p235 = pneg %p136
        %p236 = pneg %p133
        %s237 = sand.u32 %s123, 1
        %s238 = scalar_lea.sflag [#allocation4], %s237
        %s239 = sand.u32 %s123, 1
        %s240 = smul.addr %s239, 8
        %s241 = scalar_lea.vmem [#allocation8], %s240
        %v242 = vld [vmem:[%s211] sm:$0xff]
        %244 = vrot.lane.b32.xlu0 %v242, 64
        %v245 = vpop.permute.xlu0 %244
        %v247 = vld [vmem:[#allocation5] sm:$0xff]
        %v248 = vmul.f32 %v242, %v247
        %v249 = vld [vmem:[#allocation7] sm:$0xff]
        %v250 = vmul.f32 %v245, %v249
        %v251 = vadd.f32 %v248, %v250
        %252 = vst [vmem:[%s241] sm:$0xff] %v251
        %s253 = sand.u32 %s123, 1
        %s254 = scalar_lea.sflag [#allocation4], %s253
        %s255 = sand.u32 %s123, 1
        %s256 = smul.addr %s255, 8
        %s257 = scalar_lea.vmem [#allocation8], %s256
        // Predicated region
        $region45: #{tpu_custom_call.1} parent=31 // pred_check
          %p258 = pneg %p133
        $region46: #{tpu_custom_call.1} parent=31 // pred_check_branch
          %260 = sbr.rel (%p258) target = $region48
        $region47: #{tpu_custom_call.1} parent=31 // pred_region
          %s262 = ssub.s32 128, 128
          %263 = vsyncadd %s254, %s262
          %s264 = sadd.s32 %s25, %s26
          %s265 = smul.addr %s264, 128
          %s266 = scalar_lea.hbm %s3, %s265
          %s268 = sshll.u32 %s257, 4
          %s269 = int_to_ptr.vmem [resolvable:$true] %s268
          %271 = dma.vmem_to_hbm [thread:$0]  %s269, 128, %s266, %s254
        $region48: #{tpu_custom_call.1} parent=31 // pred_fallthru
          _
      $region32: #{tpu_custom_call.1} parent=5 // pred_fallthru
        _
      %p272 = scmp.le.s32.totalorder 2, %s16
      // Predicated region
      $region49: #{tpu_custom_call.1} parent=5 // pred_check
        %p273 = pneg %p272
      $region50: #{tpu_custom_call.1} parent=5 // pred_check_branch
        %275 = sbr.rel (%p273) target = $region52
      $region51: #{tpu_custom_call.1} parent=5 // pred_region
        %s276 = ssub.s32 %s16, 2
        // Predicated region
        $region53: #{tpu_custom_call.1} parent=51 // pred_check
          %p277 = pneg %p139
        $region54: #{tpu_custom_call.1} parent=51 // pred_check_branch
          %279 = sbr.rel (%p277) target = $region56
        $region55: #{tpu_custom_call.1} parent=51 // pred_region
          %s280 = sand.u32 %s124, 1
          %s281 = scalar_lea.sflag [#allocation4], %s280
          %s282 = sand.u32 %s124, 1
          %s283 = smul.addr %s282, 8
          %s284 = scalar_lea.vmem [#allocation8], %s283
          %285 = dma.done %s281, 128
        $region56: #{tpu_custom_call.1} parent=51 // pred_fallthru
          _
      $region52: #{tpu_custom_call.1} parent=5 // pred_fallthru
        _
    $region6: #{tpu_custom_call.1} parent=1 // loop_footer
      %s20 = sadd.s32 1, %s16
    $region7: #{tpu_custom_call.1} parent=1 // loop_footer_branch
      %15 = sbr.rel target = $region3
    $region8: #{tpu_custom_call.1} parent=1 // loop_exit
      _
    %286 = vsyncpa [#allocation3], 1
    %s287 = scalar_lea.sflag [#allocation3], 1
    %288 = vsyncpa %s287, 1
    %289 = vsyncpa [#allocation6], 1
    %290 = vsyncpa [#allocation4], 1
    %s291 = scalar_lea.sflag [#allocation4], 1
    %292 = vsyncpa %s291, 1

</llo_original>
